<compile_context>
chip_gen: v7x
topology: tpu7x:2x2x1
jax: 0.10.0
libtpu: 0.0.40
codegen_flags: <defaults>
</compile_context>

<pallas_src>
import functools

import jax
import jax.numpy as jnp
from jax.experimental import pallas as pl
from jax.experimental.pallas import tpu as pltpu

_VMEM_LIMIT = 32 * 1024 * 1024  # explicit scoped-VMEM limit, safe on v5e/v6e/v7x


# ----------------------------------------------------------------------------
# helpers
# ----------------------------------------------------------------------------

def _round_up(x, m):
    return (x + m - 1) // m * m


def _pad_to(x, shape):
    pads = [(0, s - d) for d, s in zip(x.shape, shape)]
    if any(p[1] for p in pads):
        return jnp.pad(x, pads)
    return x


# ----------------------------------------------------------------------------
# fused (LN ->) matmul (+ bias) (+ QuickGELU) (+ residual) kernel
# ----------------------------------------------------------------------------

def _make_matmul_kernel(*, has_ln, has_bias, has_residual, activation):
    def kernel(*refs):
        it = iter(refs)
        a_ref = next(it)
        b_ref = next(it)
        g_ref = next(it) if has_ln else None
        be_ref = next(it) if has_ln else None
        bias_ref = next(it) if has_bias else None
        res_ref = next(it) if has_residual else None
        o_ref = next(it)
        acc_ref = next(it)
        ln_ref = next(it) if has_ln else None

        @pl.when(pl.program_id(2) == 0)
        def _():
            acc_ref[...] = jnp.zeros_like(acc_ref)

        if has_ln:
            # Normalize the row block ONCE per row-block i (first j / first k
            # step) and cache it in VMEM.  The j axis is marked "arbitrary" so
            # every core's j sweep starts at 0 -> correct under megacore
            # sharding of the i axis; the A block itself is not re-DMA'd
            # across j because its index_map doesn't depend on j.
            @pl.when(jnp.logical_and(pl.program_id(1) == 0,
                                     pl.program_id(2) == 0))
            def _():
                a = a_ref[...].astype(jnp.float32)
                mean = jnp.mean(a, axis=-1, keepdims=True)
                var = jnp.mean((a - mean) ** 2, axis=-1, keepdims=True)
                a = (a - mean) * jax.lax.rsqrt(var + 1e-5)
                a = a * g_ref[...] + be_ref[...]
                ln_ref[...] = a.astype(ln_ref.dtype)

            a = ln_ref[...]
        else:
            a = a_ref[...]

        acc_ref[...] += jnp.dot(a, b_ref[...],
                                preferred_element_type=jnp.float32)

        @pl.when(pl.program_id(2) == pl.num_programs(2) - 1)
        def _():
            out = acc_ref[...]
            if has_bias:
                out = out + bias_ref[...]
            if activation == "quick_gelu":               # CLIP's QuickGELU
                out = out * jax.nn.sigmoid(1.702 * out)
            if has_residual:
                out = out + res_ref[...].astype(jnp.float32)
            o_ref[...] = out.astype(o_ref.dtype)

    return kernel


def fused_matmul(a, b, *, bias=None, ln=None, residual=None, activation=None,
                 out_dtype=jnp.bfloat16, tm_max=512, tn_max=512, tk_max=1024):
    """out = act(LN(a) @ b + bias) + residual, tiled, bf16 operands, f32 acc."""
    M, K = a.shape
    K2, N = b.shape
    assert K == K2

    # Tile selection: full-array block when the dim is small, HW-friendly tile
    # otherwise.  When LN is fused the whole feature dim must sit in one block
    # (and K stays unpadded so the statistics are exact).
    tm = M if M <= tm_max else tm_max
    tn = N if N <= tn_max else tn_max
    tk = K if (ln is not None or K <= tk_max) else tk_max
    Mp, Kp, Np = _round_up(M, tm), _round_up(K, tk), _round_up(N, tn)

    a_p = _pad_to(a.astype(jnp.bfloat16), (Mp, Kp))
    b_p = _pad_to(b.astype(jnp.bfloat16), (Kp, Np))

    in_specs = [
        pl.BlockSpec((tm, tk), lambda i, j, k: (i, k)),
        pl.BlockSpec((tk, tn), lambda i, j, k: (k, j)),
    ]
    args = [a_p, b_p]
    if ln is not None:
        gamma, beta = ln
        in_specs += [pl.BlockSpec((1, tk), lambda i, j, k: (0, k)),
                     pl.BlockSpec((1, tk), lambda i, j, k: (0, k))]
        args += [gamma.reshape(1, K).astype(jnp.float32),
                 beta.reshape(1, K).astype(jnp.float32)]
    if bias is not None:
        in_specs.append(pl.BlockSpec((1, tn), lambda i, j, k: (0, j)))
        args.append(_pad_to(bias.reshape(1, N).astype(jnp.float32), (1, Np)))
    if residual is not None:
        in_specs.append(pl.BlockSpec((tm, tn), lambda i, j, k: (i, j)))
        args.append(_pad_to(residual.astype(jnp.bfloat16), (Mp, Np)))

    scratch = [pltpu.VMEM((tm, tn), jnp.float32)]
    if ln is not None:
        scratch.append(pltpu.VMEM((tm, tk), jnp.bfloat16))   # cached LN(a) block

    # When LN is fused, only the row axis is megacore-parallel so the
    # j==0 LN-cache guard is valid on every core.
    dims = (("parallel", "arbitrary", "arbitrary") if ln is not None
            else ("parallel", "parallel", "arbitrary"))

    kernel = _make_matmul_kernel(has_ln=ln is not None, has_bias=bias is not None,
                                 has_residual=residual is not None,
                                 activation=activation)
    out = pl.pallas_call(
        kernel,
        out_shape=jax.ShapeDtypeStruct((Mp, Np), out_dtype),
        grid=(Mp // tm, Np // tn, Kp // tk),
        in_specs=in_specs,
        out_specs=pl.BlockSpec((tm, tn), lambda i, j, k: (i, j)),
        scratch_shapes=scratch,
        compiler_params=pltpu.CompilerParams(
            dimension_semantics=dims, vmem_limit_bytes=_VMEM_LIMIT),
    )(*args)
    return out[:M, :N]


# ----------------------------------------------------------------------------
# fused class-token concat + positional embedding + pre-LN (one step per batch)
# ----------------------------------------------------------------------------

def _embed_ln_kernel(xp_ref, clspos_ref, pospatch_ref, g_ref, b_ref, o_ref):
    g = g_ref[...]
    be = b_ref[...]

    def ln(x):
        mean = jnp.mean(x, axis=-1, keepdims=True)
        var = jnp.mean((x - mean) ** 2, axis=-1, keepdims=True)
        return (x - mean) * jax.lax.rsqrt(var + 1e-5) * g + be

    # row 0: class token (+ its positional embedding, pre-added in the wrapper)
    o_ref[0:1, :] = ln(clspos_ref[...]).astype(o_ref.dtype)
    # rows 1..T-1: patch embeddings + positional embeddings
    xr = xp_ref[...].astype(jnp.float32) + pospatch_ref[...]
    o_ref[1:, :] = ln(xr).astype(o_ref.dtype)


def embed_ln(x_patches, class_emb, pos_emb, gamma, beta, *, out_dtype=jnp.bfloat16):
    """[cls; patches] + pos_emb, then LayerNorm.  x_patches: [B, n_patches, D]."""
    B, n_patches, D = x_patches.shape
    T = n_patches + 1
    cls_pos = (class_emb + pos_emb[0]).reshape(1, D).astype(jnp.float32)
    pos_patch = pos_emb[1:].astype(jnp.float32)
    # TODO(synk): for very long sequences (T*D block too big), tile the rows.
    return pl.pallas_call(
        _embed_ln_kernel,
        out_shape=jax.ShapeDtypeStruct((B, T, D), out_dtype),
        grid=(B,),
        in_specs=[pl.BlockSpec((None, n_patches, D), lambda b: (b, 0, 0)),
                  pl.BlockSpec((1, D), lambda b: (0, 0)),
                  pl.BlockSpec((n_patches, D), lambda b: (0, 0)),
                  pl.BlockSpec((1, D), lambda b: (0, 0)),
                  pl.BlockSpec((1, D), lambda b: (0, 0))],
        out_specs=pl.BlockSpec((None, T, D), lambda b: (b, 0, 0)),
        compiler_params=pltpu.CompilerParams(
            dimension_semantics=("parallel",), vmem_limit_bytes=_VMEM_LIMIT),
    )(x_patches.astype(jnp.bfloat16), cls_pos, pos_patch,
      gamma.reshape(1, D).astype(jnp.float32),
      beta.reshape(1, D).astype(jnp.float32))


# ----------------------------------------------------------------------------
# multi-head attention: one grid step per batch, one head at a time,
# natural [B, T, 3D] input layout, lane-dense [B, T, D] output
# ----------------------------------------------------------------------------

def _attention_kernel(qkv_ref, o_ref, *, heads, head_dim, scale):
    D = heads * head_dim
    # Per-head processing caps live state at a single (T, T) f32 score matrix;
    # the per-iteration store lets intermediates die each head.
    # TODO(synk): on v7x with tiny B, a (B, H) grid would give the second
    # TensorCore work at the cost of lane-sparse output blocks.
    for h in range(heads):
        lo = h * head_dim
        q = qkv_ref[:, lo:lo + head_dim]
        k = qkv_ref[:, D + lo:D + lo + head_dim]
        v = qkv_ref[:, 2 * D + lo:2 * D + lo + head_dim]
        s = jax.lax.dot_general(q, k, (((1,), (1,)), ((), ())),
                                preferred_element_type=jnp.float32) * scale
        s = s - jnp.max(s, axis=-1, keepdims=True)
        p = jnp.exp(s)
        p = p * pl.reciprocal(jnp.sum(p, axis=-1, keepdims=True), approx=True)
        out_h = jnp.dot(p.astype(v.dtype), v, preferred_element_type=jnp.float32)
        # heads concatenated on the last axis -> lane-dense [T, D] output block
        o_ref[:, lo:lo + head_dim] = out_h.astype(o_ref.dtype)


def multihead_attention(qkv, *, heads, scale):
    """qkv: [B, T, 3*D] -> [B, T, D] (bf16), ready for the w_o matmul."""
    B, T, threeD = qkv.shape
    D = threeD // 3
    hd = D // heads
    return pl.pallas_call(
        functools.partial(_attention_kernel, heads=heads, head_dim=hd, scale=scale),
        out_shape=jax.ShapeDtypeStruct((B, T, D), jnp.bfloat16),
        grid=(B,),
        in_specs=[pl.BlockSpec((None, T, threeD), lambda b: (b, 0, 0))],
        out_specs=pl.BlockSpec((None, T, D), lambda b: (b, 0, 0)),
        compiler_params=pltpu.CompilerParams(
            dimension_semantics=("parallel",), vmem_limit_bytes=_VMEM_LIMIT),
    )(qkv.astype(jnp.bfloat16))


# ----------------------------------------------------------------------------
# CLIP-style image encoder (forward of ImageCLIP == model.encode_image(image))
# ----------------------------------------------------------------------------

def init_params(key, *, in_ch, patch, width, heads, mlp_dim, out_dim, num_tokens):
    ks = jax.random.split(key, 8)
    s = 0.02
    p = {
        # patch-embed conv (no bias in CLIP), stored as [C*P*P, D] matmul weight
        "conv_w": jax.random.normal(ks[0], (in_ch * patch * patch, width)) * s,
        "class_emb": jax.random.normal(ks[1], (width,)) * s,
        "pos_emb": jax.random.normal(ks[2], (num_tokens, width)) * s,
        "ln_pre_g": jnp.ones((width,)), "ln_pre_b": jnp.zeros((width,)),
        # transformer block
        "ln1_g": jnp.ones((width,)), "ln1_b": jnp.zeros((width,)),
        "w_qkv": jax.random.normal(ks[3], (width, 3 * width)) * s,
        "b_qkv": jnp.zeros((3 * width,)),
        "w_o": jax.random.normal(ks[4], (width, width)) * s,
        "b_o": jnp.zeros((width,)),
        "ln2_g": jnp.ones((width,)), "ln2_b": jnp.zeros((width,)),
        "w_fc1": jax.random.normal(ks[5], (width, mlp_dim)) * s,
        "b_fc1": jnp.zeros((mlp_dim,)),
        "w_fc2": jax.random.normal(ks[6], (mlp_dim, width)) * s,
        "b_fc2": jnp.zeros((width,)),
        # head
        "ln_post_g": jnp.ones((width,)), "ln_post_b": jnp.zeros((width,)),
        "proj": jax.random.normal(ks[7], (width, out_dim)) * s,   # no bias in CLIP
    }
    return {k: v.astype(jnp.float32) for k, v in p.items()}


def encode_image(image, params, *, patch, heads):
    B, C, H, W = image.shape                       # NCHW, PyTorch convention
    gh, gw = H // patch, W // patch
    n_patches = gh * gw
    D = params["conv_w"].shape[1]
    hd = D // heads
    T = n_patches + 1
    adt = jnp.bfloat16                             # activation dtype

    # --- patch embedding: strided conv == unfold + matmul (Pallas MXU, no bias)
    # TODO(synk): the unfold reshape/transpose itself stays as XLA glue.
    patches = image.reshape(B, C, gh, patch, gw, patch)
    patches = patches.transpose(0, 2, 4, 1, 3, 5).reshape(B * n_patches,
                                                          C * patch * patch)
    xp = fused_matmul(patches, params["conv_w"], out_dtype=adt)
    xp = xp.reshape(B, n_patches, D)

    # --- class token + positional embedding + pre-LN (single fused kernel) ----
    x = embed_ln(xp, params["class_emb"], params["pos_emb"],
                 params["ln_pre_g"], params["ln_pre_b"], out_dtype=adt)
    x = x.reshape(B * T, D)

    # --- attention: ln1 fused into the qkv matmul; residual fused into w_o -----
    qkv = fused_matmul(x, params["w_qkv"], bias=params["b_qkv"],
                       ln=(params["ln1_g"], params["ln1_b"]), out_dtype=adt)
    attn = multihead_attention(qkv.reshape(B, T, 3 * D), heads=heads,
                               scale=1.0 / (hd ** 0.5))          # [B, T, D]
    x = fused_matmul(attn.reshape(B * T, D), params["w_o"], bias=params["b_o"],
                     residual=x, out_dtype=adt)

    # --- MLP: ln2 + QuickGELU fused into fc1; residual fused into fc2 ----------
    h = fused_matmul(x, params["w_fc1"], bias=params["b_fc1"],
                     ln=(params["ln2_g"], params["ln2_b"]),
                     activation="quick_gelu", out_dtype=adt)
    x = fused_matmul(h, params["w_fc2"], bias=params["b_fc2"],
                     residual=x, out_dtype=adt)

    # --- post-LN on class token fused into the output projection (no bias) -----
    cls_tok = x.reshape(B, T, D)[:, 0, :]                         # [B, D]
    y = fused_matmul(cls_tok, params["proj"],
                     ln=(params["ln_post_g"], params["ln_post_b"]),
                     out_dtype=jnp.float32)
    return y                                                      # [B, out_dim]


# ----------------------------------------------------------------------------
# Pure-JAX f32 reference (sanity check of the Pallas kernels)
# ----------------------------------------------------------------------------

def encode_image_ref(image, params, *, patch, heads):
    B, C, H, W = image.shape
    gh, gw = H // patch, W // patch
    n_patches = gh * gw
    D = params["conv_w"].shape[1]
    hd = D // heads
    T = n_patches + 1

    def ln(x, g, b):
        m = jnp.mean(x, -1, keepdims=True)
        v = jnp.mean((x - m) ** 2, -1, keepdims=True)
        return (x - m) * jax.lax.rsqrt(v + 1e-5) * g + b

    patches = image.reshape(B, C, gh, patch, gw, patch)
    patches = patches.transpose(0, 2, 4, 1, 3, 5).reshape(B * n_patches, -1)
    x = (patches @ params["conv_w"]).reshape(B, n_patches, D)
    cls = jnp.broadcast_to(params["class_emb"].reshape(1, 1, D), (B, 1, D))
    x = jnp.concatenate([cls, x], axis=1) + params["pos_emb"][None]
    x = ln(x, params["ln_pre_g"], params["ln_pre_b"])

    h = ln(x, params["ln1_g"], params["ln1_b"])
    qkv = h @ params["w_qkv"] + params["b_qkv"]
    q, k, v = jnp.split(qkv, 3, axis=-1)
    q = q.reshape(B, T, heads, hd).transpose(0, 2, 1, 3)
    k = k.reshape(B, T, heads, hd).transpose(0, 2, 1, 3)
    v = v.reshape(B, T, heads, hd).transpose(0, 2, 1, 3)
    s = jnp.einsum("bhqd,bhkd->bhqk", q, k) / (hd ** 0.5)
    p = jax.nn.softmax(s, axis=-1)
    attn = jnp.einsum("bhqk,bhkd->bhqd", p, v).transpose(0, 2, 1, 3).reshape(B, T, D)
    x = x + (attn @ params["w_o"] + params["b_o"])

    h = ln(x, params["ln2_g"], params["ln2_b"])
    h = h @ params["w_fc1"] + params["b_fc1"]
    h = h * jax.nn.sigmoid(1.702 * h)
    x = x + (h @ params["w_fc2"] + params["b_fc2"])

    y = ln(x[:, 0, :], params["ln_post_g"], params["ln_post_b"])
    return y @ params["proj"]


# ----------------------------------------------------------------------------

if __name__ == "__main__":
    B, C, IMG, PATCH = 2, 3, 16, 8
    WIDTH, HEADS, OUT = 32, 4, 16
    MLP = 4 * WIDTH
    N_TOK = (IMG // PATCH) ** 2 + 1

    key = jax.random.PRNGKey(0)
    k_img, k_par = jax.random.split(key)
    image = jax.random.normal(k_img, (B, C, IMG, IMG), dtype=jnp.float32)
    params = init_params(k_par, in_ch=C, patch=PATCH, width=WIDTH, heads=HEADS,
                         mlp_dim=MLP, out_dim=OUT, num_tokens=N_TOK)

    out = encode_image(image, params, patch=PATCH, heads=HEADS)
    out = jax.block_until_ready(out)

    ref = encode_image_ref(image, params, patch=PATCH, heads=HEADS)
    assert out.shape == (B, OUT), out.shape
    # bf16 activations + approx reciprocal => relaxed tolerance vs f32 reference
    max_err = float(jnp.max(jnp.abs(out - ref)))
    assert jnp.allclose(out, ref, atol=3e-2, rtol=3e-2), max_err

    print("KERNEL_OK")
</pallas_src>

<mosaic_0001>
module attributes {stable_mosaic.version = 11 : i64} {
  func.func @kernel(%arg0: i32, %arg1: i32, %arg2: i32, %arg3: memref<8x192xbf16, #tpu.memory_space<vmem>>, %arg4: memref<192x32xbf16, #tpu.memory_space<vmem>>, %arg5: memref<8x32xbf16, #tpu.memory_space<vmem>>, %arg6: memref<8x32xf32, #tpu.memory_space<vmem>>) attributes {dimension_semantics = [#tpu.dimension_semantics<parallel>, #tpu.dimension_semantics<parallel>, #tpu.dimension_semantics<arbitrary>], iteration_bounds = array<i64: 1, 1, 1>, scalar_prefetch = 0 : i64, scratch_operands = 1 : i64, tpu.core_type = #tpu.core_type<tc>, window_params = [{transform_indices = @transform_0, window_bounds = array<i64: 8, 192>}, {transform_indices = @transform_1, window_bounds = array<i64: 192, 32>}, {transform_indices = @transform_2, window_bounds = array<i64: 8, 32>}]} {
    %c0_i32 = arith.constant 0 : i32
    %0 = arith.cmpi eq, %arg2, %c0_i32 : i32
    %1 = arith.extui %0 : i1 to i32
    %c0_i32_0 = arith.constant 0 : i32
    %2 = arith.cmpi ne, %1, %c0_i32_0 : i32
    scf.if %2 {
      %cst_10 = arith.constant 0.000000e+00 : f32
      %12 = vector.broadcast %cst_10 : f32 to vector<8x32xf32>
      %c0_11 = arith.constant 0 : index
      %c0_12 = arith.constant 0 : index
      %13 = vector.load %arg6[%c0_11, %c0_12] : memref<8x32xf32, #tpu.memory_space<vmem>>, vector<8x32xf32>
      tpu.vector_store %arg6[%c0_11, %c0_12], %12 {strides = array<i32>} : memref<8x32xf32, #tpu.memory_space<vmem>>, vector<8x32xf32>,
    } else {
    }
    %c0 = arith.constant 0 : index
    %c0_1 = arith.constant 0 : index
    %3 = vector.load %arg3[%c0, %c0_1] : memref<8x192xbf16, #tpu.memory_space<vmem>>, vector<8x192xbf16>
    %c0_2 = arith.constant 0 : index
    %c0_3 = arith.constant 0 : index
    %4 = vector.load %arg6[%c0_2, %c0_3] : memref<8x32xf32, #tpu.memory_space<vmem>>, vector<8x32xf32>
    %c0_4 = arith.constant 0 : index
    %c0_5 = arith.constant 0 : index
    %5 = vector.load %arg4[%c0_4, %c0_5] : memref<192x32xbf16, #tpu.memory_space<vmem>>, vector<192x32xbf16>
    %cst = arith.constant dense<0.000000e+00> : vector<8x32xf32>
    %6 = tpu.matmul %3, %5, %cst {dimension_numbers = #tpu.dot_dimension_numbers<[1], [0], [0], [1], [0, 0, 1, 1], [], []>} : vector<8x192xbf16>, vector<192x32xbf16>, vector<8x32xf32> -> vector<8x32xf32>
    %7 = arith.addf %4, %6 : vector<8x32xf32>
    %c0_6 = arith.constant 0 : index
    %c0_7 = arith.constant 0 : index
    %8 = vector.load %arg6[%c0_6, %c0_7] : memref<8x32xf32, #tpu.memory_space<vmem>>, vector<8x32xf32>
    tpu.vector_store %arg6[%c0_6, %c0_7], %7 {strides = array<i32>} : memref<8x32xf32, #tpu.memory_space<vmem>>, vector<8x32xf32>,
    %c0_i32_8 = arith.constant 0 : i32
    %9 = arith.cmpi eq, %arg2, %c0_i32_8 : i32
    %10 = arith.extui %9 : i1 to i32
    %c0_i32_9 = arith.constant 0 : i32
    %11 = arith.cmpi ne, %10, %c0_i32_9 : i32
    scf.if %11 {
      %c0_10 = arith.constant 0 : index
      %c0_11 = arith.constant 0 : index
      %12 = vector.load %arg6[%c0_10, %c0_11] : memref<8x32xf32, #tpu.memory_space<vmem>>, vector<8x32xf32>
      %13 = arith.truncf %12 : vector<8x32xf32> to vector<8x32xbf16>
      %c0_12 = arith.constant 0 : index
      %c0_13 = arith.constant 0 : index
      %14 = vector.load %arg5[%c0_12, %c0_13] : memref<8x32xbf16, #tpu.memory_space<vmem>>, vector<8x32xbf16>
      tpu.vector_store %arg5[%c0_12, %c0_13], %13 {strides = array<i32>} : memref<8x32xbf16, #tpu.memory_space<vmem>>, vector<8x32xbf16>,
    } else {
    }
    return
  }
  func.func @transform_0(%arg0: i32, %arg1: i32, %arg2: i32) -> (i32, i32) {
    %c0_i32 = arith.constant 0 : i32
    return %arg0, %arg2 : i32, i32
  }
  func.func @transform_1(%arg0: i32, %arg1: i32, %arg2: i32) -> (i32, i32) {
    %c0_i32 = arith.constant 0 : i32
    return %arg2, %arg1 : i32, i32
  }
  func.func @transform_2(%arg0: i32, %arg1: i32, %arg2: i32) -> (i32, i32) {
    %c0_i32 = arith.constant 0 : i32
    return %arg0, %arg1 : i32, i32
  }
}

</mosaic_0001>

<llo_original>
// kernel: tpu_custom_call.1
$region0: #{tpu_custom_call.1}
  #allocation0 [shape = 'u32[]', space=smem, size = 0x4, offset = 0x4, fixed_abs, tag = 'smem constant byte address 0x4 - core index']
  #allocation1 [shape = 'u32[144,128]{1,0:T(1,128)}', space=vmem, size = 0x12000, scoped, tag = 'internal scratch']
  #allocation2 [shape = 'f32[8,32]{1,0:T(8,128)}', space=vmem, size = 0x1000, scoped, tag = 'scratch operand']
  %s0 = inlined_call_operand.vmem [shape: bf16[8,192], index: 0, kind: input, shape index: {}]
  %s1 = inlined_call_operand.vmem [shape: bf16[192,32], index: 1, kind: input, shape index: {}]
  %s2 = inlined_call_operand.hbm [shape: bf16[8,32], index: 2, kind: output, shape index: {}]
  %s3 = sld [smem:[#allocation0]]
  $region26: #{tpu_custom_call.1} parent=0
    _
  %s5 = ssub.s32 1, %s3
  %s6 = scalar_select 0, %s5, %s3
  $region1: #{tpu_custom_call.1} parent=0
    #allocation3 [shape = 'u8[2048]{0}', space=vmem, size = 0x800, scoped, tag = 'output window, operand 0, single buffered']
    #allocation4 [shape = 's32[1]{0}', space=sflag, size = 0x4, scoped, tag = 'scoped memory for tpu_custom_call.1']
    %7 = vsyncpa [#allocation4], 0
    // Predicated region
    $region2: #{tpu_custom_call.1} parent=1 // pred_check
      _
    $region3: #{tpu_custom_call.1} parent=1 // pred_check_branch
      %9 = sbr.rel (0) target = $region5
    $region4: #{tpu_custom_call.1} parent=1 // pred_region
      _
    $region5: #{tpu_custom_call.1} parent=1 // pred_fallthru
      _
    // Predicated region
    $region6: #{tpu_custom_call.1} parent=1 // pred_check
      _
    $region7: #{tpu_custom_call.1} parent=1 // pred_check_branch
      %11 = sbr.rel (0) target = $region9
    $region8: #{tpu_custom_call.1} parent=1 // pred_region
      _
    $region9: #{tpu_custom_call.1} parent=1 // pred_fallthru
      _
    %p13 = scmp.eq.s32.totalorder 0, 0
    // Predicated region
    $region10: #{tpu_custom_call.1} parent=1 // pred_check
      %p14 = pneg %p13
    $region11: #{tpu_custom_call.1} parent=1 // pred_check_branch
      %16 = sbr.rel (%p14) target = $region13
    $region12: #{tpu_custom_call.1} parent=1 // pred_region
      %vm17 = vcmask 261120
      %18 = vst.msk [vmem:[#allocation2] sm:$0xff] %vm17, 0.0
    $region13: #{tpu_custom_call.1} parent=1 // pred_fallthru
      _
    %v19 = vld [vmem:[%s0] sm:$0xff]
    %v20 = vld [vmem:[#allocation2] sm:$0xff]
    %v21 = vld [vmem:[%s1] sm:$0xf]
    %v22 = vld [vmem:[%s1 + $0x4] sm:$0xf]
    %v23 = vld [vmem:[%s1 + $0x8] sm:$0xf]
    %v24 = vld [vmem:[%s1 + $0xc] sm:$0xf]
    %v25 = vld [vmem:[%s1 + $0x10] sm:$0xf]
    %v26 = vld [vmem:[%s1 + $0x14] sm:$0xf]
    %v27 = vld [vmem:[%s1 + $0x18] sm:$0xf]
    %v28 = vld [vmem:[%s1 + $0x1c] sm:$0xf]
    %v29 = vld [vmem:[%s1 + $0x20] sm:$0xf]
    %v30 = vld [vmem:[%s1 + $0x24] sm:$0xf]
    %v31 = vld [vmem:[%s1 + $0x28] sm:$0xf]
    %v32 = vld [vmem:[%s1 + $0x2c] sm:$0xf]
    %v33 = vld [vmem:[%s1 + $0x30] sm:$0xf]
    %v34 = vld [vmem:[%s1 + $0x34] sm:$0xf]
    %v35 = vld [vmem:[%s1 + $0x38] sm:$0xf]
    %v36 = vld [vmem:[%s1 + $0x3c] sm:$0xf]
    %v37 = vld [vmem:[%s1 + $0x40] sm:$0xf]
    %v38 = vld [vmem:[%s1 + $0x44] sm:$0xf]
    %v39 = vld [vmem:[%s1 + $0x48] sm:$0xf]
    %v40 = vld [vmem:[%s1 + $0x4c] sm:$0xf]
    %v41 = vld [vmem:[%s1 + $0x50] sm:$0xf]
    %v42 = vld [vmem:[%s1 + $0x54] sm:$0xf]
    %v43 = vld [vmem:[%s1 + $0x58] sm:$0xf]
    %v44 = vld [vmem:[%s1 + $0x5c] sm:$0xf]
    %v46 = vunpack.c.l.b16 %v19
    %v47 = vunpack.c.h.b16 %v19
    %v48 = vpack.c.b16 %v46, %v46
    %v49 = vpack.c.b16 %v47, %v47
    %v75 = vunpack.c.l.b16 %v21
    %v76 = vunpack.c.l.b16 %v22
    %v77 = vunpack.c.l.b16 %v23
    %v78 = vunpack.c.l.b16 %v24
    %v79 = vunpack.c.l.b16 %v25
    %v80 = vunpack.c.l.b16 %v26
    %v81 = vunpack.c.l.b16 %v27
    %v82 = vunpack.c.l.b16 %v28
    %v83 = vunpack.c.l.b16 %v29
    %v84 = vunpack.c.l.b16 %v30
    %v85 = vunpack.c.l.b16 %v31
    %v86 = vunpack.c.l.b16 %v32
    %v87 = vunpack.c.l.b16 %v33
    %v88 = vunpack.c.l.b16 %v34
    %v89 = vunpack.c.l.b16 %v35
    %v90 = vunpack.c.l.b16 %v36
    %v91 = vunpack.c.l.b16 %v37
    %v92 = vunpack.c.l.b16 %v38
    %v93 = vunpack.c.l.b16 %v39
    %v94 = vunpack.c.l.b16 %v40
    %v95 = vunpack.c.l.b16 %v41
    %v96 = vunpack.c.l.b16 %v42
    %v97 = vunpack.c.l.b16 %v43
    %v98 = vunpack.c.l.b16 %v44
    %v99 = vpack.c.b16 %v76, %v75
    %v100 = vpack.c.b16 %v78, %v77
    %v101 = vpack.c.b16 %v80, %v79
    %v102 = vpack.c.b16 %v82, %v81
    %v103 = vpack.c.b16 %v84, %v83
    %v104 = vpack.c.b16 %v86, %v85
    %v105 = vpack.c.b16 %v88, %v87
    %v106 = vpack.c.b16 %v90, %v89
    %v107 = vpack.c.b16 %v92, %v91
    %v108 = vpack.c.b16 %v94, %v93
    %v109 = vpack.c.b16 %v96, %v95
    %v110 = vpack.c.b16 %v98, %v97
    %vm123 = vcmask 523264
    %v125 = vsel %vm123, %v49, 0
    %127 = vmatprep.subr.bf16.mxu0 0
    %128 = vmatpush1.bf16.msra.mxu0 %v99
    %129 = vmatprep.subr.bf16.mxu0 0
    %130 = vmatpush1.bf16.msra.mxu0 %v100
    %131 = vmatprep.subr.bf16.mxu0 0
    %132 = vmatpush1.bf16.msra.mxu0 %v101
    %133 = vmatprep.subr.bf16.mxu0 0
    %134 = vmatpush1.bf16.msra.mxu0 %v102
    %135 = vmatprep.subr.bf16.mxu0 0
    %136 = vmatpush1.bf16.msra.mxu0 %v103
    %137 = vmatprep.subr.bf16.mxu0 0
    %138 = vmatpush1.bf16.msra.mxu0 %v104
    %139 = vmatprep.subr.bf16.mxu0 0
    %140 = vmatpush1.bf16.msra.mxu0 %v105
    %141 = vmatprep.subr.bf16.mxu0 0
    %142 = vmatpush1.bf16.msra.mxu0 %v106
    %143 = vmatprep.subr.bf16.mxu0 0
    %144 = vmatpush1.bf16.msra.mxu0 %v107
    %145 = vmatprep.subr.bf16.mxu0 0
    %146 = vmatpush1.bf16.msra.mxu0 %v108
    %147 = vmatprep.subr.bf16.mxu0 0
    %148 = vmatpush1.bf16.msra.mxu0 %v109
    %149 = vmatprep.subr.bf16.mxu0 0
    %150 = vmatpush1.bf16.msra.mxu0 %v110
    %151 = vmatprep.subr.bf16.mxu0 0
    %152 = vmatpush1.bf16.msra.mxu0 0
    %153 = vmatprep.subr.bf16.mxu0 0
    %154 = vmatpush1.bf16.msra.mxu0 0
    %155 = vmatprep.subr.bf16.mxu0 0
    %156 = vmatpush1.bf16.msra.mxu0 0
    %157 = vmatprep.subr.bf16.mxu0 0
    %158 = vmatpush1.bf16.msra.mxu0 0
    %159 = vmatprep.mubr.bf16.mxu0 %v125
    %160 = vmatmul.mubr.bf16.gmra.mrb[0].mxu0 %v48
    %v161 = vpop.f32.mrb[0].mxu0
    %v162 = vadd.f32 0.0, %v161
    %v163 = vpop.f32.mrb[0].mxu0
    %v164 = vpop.f32.mrb[0].mxu0
    %v165 = vpop.f32.mrb[0].mxu0
    %166 = vdwg.mxu0
    %v167 = vadd.f32 %v20, %v162
    %vm168 = vcmask 261120
    %169 = vst.msk [vmem:[#allocation2] sm:$0xff] %vm168, %v167
    // Predicated region
    $region14: #{tpu_custom_call.1} parent=1 // pred_check
      %p170 = pneg %p13
    $region15: #{tpu_custom_call.1} parent=1 // pred_check_branch
      %172 = sbr.rel (%p170) target = $region17
    $region16: #{tpu_custom_call.1} parent=1 // pred_region
      %v173 = vld [vmem:[#allocation2] sm:$0xff]
      %v174 = vpack.c.bf16 %v173, %v173
      %vm175 = vcmask 257024
      %176 = vst.msk [vmem:[#allocation3] sm:$0xf] %vm175, %v174
    $region17: #{tpu_custom_call.1} parent=1 // pred_fallthru
      _
    // Predicated region
    $region18: #{tpu_custom_call.1} parent=1 // pred_check
      _
    $region19: #{tpu_custom_call.1} parent=1 // pred_check_branch
      %178 = sbr.rel (0) target = $region21
    $region20: #{tpu_custom_call.1} parent=1 // pred_region
      %s180 = ssub.s32 64, 64
      %181 = vsyncadd [#allocation4], %s180
      %s183 = sshll.u32 [#allocation3], 4
      %s184 = int_to_ptr.vmem [resolvable:$true] %s183
      %186 = dma.vmem_to_hbm [thread:$0]  %s184, 64, %s2, [#allocation4]
    $region21: #{tpu_custom_call.1} parent=1 // pred_fallthru
      _
    // Predicated region
    $region22: #{tpu_custom_call.1} parent=1 // pred_check
      _
    $region23: #{tpu_custom_call.1} parent=1 // pred_check_branch
      %188 = sbr.rel (0) target = $region25
    $region24: #{tpu_custom_call.1} parent=1 // pred_region
      %189 = dma.done [#allocation4], 64
    $region25: #{tpu_custom_call.1} parent=1 // pred_fallthru
      _
    %190 = vsyncpa [#allocation4], 1

</llo_original>
